<compile_context>
chip_gen: v5e
topology: v5e:2x2
jax: 0.10.0
libtpu: 0.0.40
codegen_flags: <defaults>
</compile_context>

<pallas_src>
import jax
import jax.numpy as jnp
from jax.experimental import pallas as pl
from jax.experimental.pallas import tpu as pltpu


def _round_up(v, m):
    return (v + m - 1) // m * m


def ffn_kernel(x_ref, w1_ref, b1_ref, w2_ref, b2_ref, o_ref):
    # x_ref:  (C_p, TN)   input tile, already in compute dtype (channels x tokens)
    # w1_ref: (H_p, C_p)  folded pw1 weight (compute dtype)
    # b1_ref: (H_p, 1)    folded pw1 bias (f32)
    # w2_ref: (C_p, H_p)  folded pw2 weight (compute dtype)
    # b2_ref: (C_p, 1)    folded pw2 bias (f32)
    # o_ref:  (C_p, TN)
    cdt = w1_ref.dtype

    # pw1 (1x1 conv + folded BN scale); bias + ReLU in f32.
    h = jnp.dot(w1_ref[...], x_ref[...], preferred_element_type=jnp.float32)
    h = jnp.maximum(h + b1_ref[...], 0.0)

    # pw2 (1x1 conv + folded BN scale); bias in f32, cast on store.
    y = jnp.dot(w2_ref[...], h.astype(cdt), preferred_element_type=jnp.float32)
    o_ref[...] = (y + b2_ref[...]).astype(o_ref.dtype)


def _pick_tile_n(n, c_p, h_p, comp_bytes, out_bytes, requested, vmem_budget_bytes):
    """Largest 128-multiple token tile fitting a rough per-step VMEM budget."""
    # Bytes per token column per pipeline step:
    #   2x double-buffered x tile, 2x double-buffered out tile,
    #   f32 h + compute-dtype copy of h, f32 y before the output cast.
    per_tok = (2 * c_p * comp_bytes
               + 2 * c_p * out_bytes
               + h_p * (4 + comp_bytes)
               + c_p * 4)
    max_tile = max(128, (vmem_budget_bytes // max(per_tok, 1)) // 128 * 128)
    tile = min(requested, max_tile)
    tile = max(128, (tile // 128) * 128)
    tile = min(tile, _round_up(n, 128))   # never bigger than needed to cover N
    return tile


def ffn_pallas(x, w1, b1, w2, b2, *, tile_n=1024,
               compute_dtype=jnp.bfloat16, out_dtype=None,
               vmem_budget_bytes=24 << 20):
    """FFN forward on NCL input.

    x : (B, C, N)
    w1: (H, C)  folded pw1 weight (BN scale already multiplied in)
    b1: (H,)    folded pw1 bias
    w2: (C, H)  folded pw2 weight
    b2: (C,)    folded pw2 bias
    """
    B, C, N = x.shape
    H = w1.shape[0]
    out_dtype = x.dtype if out_dtype is None else out_dtype

    comp_bytes = jnp.dtype(compute_dtype).itemsize
    out_bytes = jnp.dtype(out_dtype).itemsize
    # Sublane packing alignment: 8 for f32, 16 for bf16.
    align = max(8, 32 // max(comp_bytes, 1))

    C_p = _round_up(C, align)
    H_p = _round_up(H, align)

    # Cast x to the compute dtype in the wrapper (halves the x DMA / VMEM
    # footprint when compute_dtype is bf16).
    if x.dtype != compute_dtype:
        x = x.astype(compute_dtype)
    # Channel padding only when shapes are ragged: channels are the contraction
    # axis, so padded rows must be real zeros (never undefined edge data).
    if C_p != C:
        x = jnp.pad(x, ((0, 0), (0, C_p - C), (0, 0)))

    w1_p, w2_p = w1, w2
    b1_p = b1.reshape(H, 1)
    b2_p = b2.reshape(C, 1)
    if C_p != C or H_p != H:
        w1_p = jnp.pad(w1_p, ((0, H_p - H), (0, C_p - C)))
        w2_p = jnp.pad(w2_p, ((0, C_p - C), (0, H_p - H)))
        b1_p = jnp.pad(b1_p, ((0, H_p - H), (0, 0)))
        b2_p = jnp.pad(b2_p, ((0, C_p - C), (0, 0)))
    w1_p = w1_p.astype(compute_dtype)
    w2_p = w2_p.astype(compute_dtype)
    b1_p = b1_p.astype(jnp.float32)
    b2_p = b2_p.astype(jnp.float32)

    tile_n = _pick_tile_n(N, C_p, H_p, comp_bytes, out_bytes,
                          _round_up(tile_n, 128), vmem_budget_bytes)
    # Keep both TensorCores busy on megacore chips (v7x) when a single batch
    # would otherwise yield a 1-step grid.
    if B == 1 and N > 128 and pl.cdiv(N, tile_n) < 2:
        tile_n = max(128, _round_up(pl.cdiv(N, 2), 128))

    grid = (B, pl.cdiv(N, tile_n))   # token axis unpadded; edge block is masked

    out = pl.pallas_call(
        ffn_kernel,
        out_shape=jax.ShapeDtypeStruct((B, C_p, N), out_dtype),
        grid_spec=pltpu.PrefetchScalarGridSpec(
            num_scalar_prefetch=0,
            grid=grid,
            in_specs=[
                # (batch squeezed, full channels, token tile)
                pl.BlockSpec((None, C_p, tile_n), lambda b, n: (b, 0, n)),
                pl.BlockSpec((H_p, C_p), lambda b, n: (0, 0)),
                pl.BlockSpec((H_p, 1), lambda b, n: (0, 0)),
                pl.BlockSpec((C_p, H_p), lambda b, n: (0, 0)),
                pl.BlockSpec((C_p, 1), lambda b, n: (0, 0)),
            ],
            out_specs=pl.BlockSpec((None, C_p, tile_n), lambda b, n: (b, 0, n)),
        ),
        compiler_params=pltpu.CompilerParams(
            dimension_semantics=("parallel", "parallel"),
            vmem_limit_bytes=min(vmem_budget_bytes + (8 << 20), 48 << 20),
        ),
    )(x, w1_p, b1_p, w2_p, b2_p)

    if C_p != C:
        out = out[:, :C, :]   # only in the uncommon ragged-channel case
    return out


def fold_conv_bn(conv_w, gamma, beta, running_mean, running_var, eps=1e-5):
    """Fold eval-mode BatchNorm1d into a 1x1 Conv1d weight.

    conv_w: (out, in)  -- Conv1d ks=1 weight with the trailing kernel dim squeezed.
    Returns (w_folded (out, in), b_folded (out,)).
    """
    scale = gamma / jnp.sqrt(running_var + eps)
    w = conv_w * scale[:, None]
    b = beta - running_mean * scale
    return w, b


def ffn_reference(x, w1, b1, w2, b2):
    # Pure-JAX f32 reference, NCL layout.
    h = jnp.einsum("hc,bcn->bhn", w1, x) + b1[None, :, None]
    h = jnp.maximum(h, 0.0)
    y = jnp.einsum("ch,bhn->bcn", w2, h) + b2[None, :, None]
    return y


def _make_case(key, B, embed_dim, hidden_dim, N):
    kx, kw1, kw2, kbn = jax.random.split(key, 4)
    x = jax.random.normal(kx, (B, embed_dim, N), dtype=jnp.float32)
    conv_w1 = jax.random.normal(kw1, (hidden_dim, embed_dim), jnp.float32) * 0.1
    conv_w2 = jax.random.normal(kw2, (embed_dim, hidden_dim), jnp.float32) * 0.1
    k1, k2, k3, k4, k5, k6, k7, k8 = jax.random.split(kbn, 8)
    g1 = 1.0 + 0.1 * jax.random.normal(k1, (hidden_dim,), jnp.float32)
    be1 = 0.1 * jax.random.normal(k2, (hidden_dim,), jnp.float32)
    m1 = 0.1 * jax.random.normal(k3, (hidden_dim,), jnp.float32)
    v1 = 1.0 + 0.1 * jnp.abs(jax.random.normal(k4, (hidden_dim,), jnp.float32))
    g2 = 1.0 + 0.1 * jax.random.normal(k5, (embed_dim,), jnp.float32)
    be2 = 0.1 * jax.random.normal(k6, (embed_dim,), jnp.float32)
    m2 = 0.1 * jax.random.normal(k7, (embed_dim,), jnp.float32)
    v2 = 1.0 + 0.1 * jnp.abs(jax.random.normal(k8, (embed_dim,), jnp.float32))
    w1, b1 = fold_conv_bn(conv_w1, g1, be1, m1, v1)
    w2, b2 = fold_conv_bn(conv_w2, g2, be2, m2, v2)
    return x, w1, b1, w2, b2


if __name__ == "__main__":
    key = jax.random.PRNGKey(0)
    k_a, k_b = jax.random.split(key)

    # Case 1: small aligned shapes consistent with FFN(embed_dim, hidden_dim)
    # on (B, C, N) input -- no padding path, single token block.
    B, embed_dim, hidden_dim, N = 2, 16, 32, 8
    x, w1, b1, w2, b2 = _make_case(k_a, B, embed_dim, hidden_dim, N)
    ref = ffn_reference(x, w1, b1, w2, b2)

    out_f32 = jax.block_until_ready(
        ffn_pallas(x, w1, b1, w2, b2, compute_dtype=jnp.float32))
    assert out_f32.shape == (B, embed_dim, N)
    assert jnp.allclose(out_f32, ref, atol=1e-3, rtol=1e-3)

    out_bf16 = jax.block_until_ready(ffn_pallas(x, w1, b1, w2, b2))
    assert out_bf16.shape == (B, embed_dim, N)
    assert jnp.allclose(out_bf16, ref, atol=5e-2, rtol=5e-2)

    # Case 2: ragged channels + token count not a multiple of the tile + B == 1
    # (exercises zero-padded contraction channels, masked edge token block, and
    # the two-TensorCore tile split).
    B2, e2, h2, N2 = 1, 20, 52, 300
    x2, w12, b12, w22, b22 = _make_case(k_b, B2, e2, h2, N2)
    ref2 = ffn_reference(x2, w12, b12, w22, b22)
    out2 = jax.block_until_ready(
        ffn_pallas(x2, w12, b12, w22, b22, compute_dtype=jnp.float32))
    assert out2.shape == (B2, e2, N2)
    assert jnp.allclose(out2, ref2, atol=1e-3, rtol=1e-3)

    print("KERNEL_OK")
</pallas_src>

<mosaic_0001>
module attributes {stable_mosaic.version = 11 : i64} {
  func.func @ffn_kernel(%arg0: i32, %arg1: i32, %arg2: memref<1x16x128xf32, #tpu.memory_space<vmem>>, %arg3: memref<32x16xf32, #tpu.memory_space<vmem>>, %arg4: memref<32x1xf32, #tpu.memory_space<vmem>>, %arg5: memref<16x32xf32, #tpu.memory_space<vmem>>, %arg6: memref<16x1xf32, #tpu.memory_space<vmem>>, %arg7: memref<1x16x128xf32, #tpu.memory_space<vmem>>) attributes {dimension_semantics = [#tpu.dimension_semantics<parallel>, #tpu.dimension_semantics<parallel>], iteration_bounds = array<i64: 2, 1>, scalar_prefetch = 0 : i64, scratch_operands = 0 : i64, tpu.core_type = #tpu.core_type<tc>, window_params = [{transform_indices = @transform_0, window_bounds = array<i64: 1, 16, 128>}, {pipeline_mode = #tpu.pipeline_mode<synchronous>, transform_indices = @transform_1, window_bounds = array<i64: 32, 16>}, {pipeline_mode = #tpu.pipeline_mode<synchronous>, transform_indices = @transform_2, window_bounds = array<i64: 32, 1>}, {pipeline_mode = #tpu.pipeline_mode<synchronous>, transform_indices = @transform_3, window_bounds = array<i64: 16, 32>}, {pipeline_mode = #tpu.pipeline_mode<synchronous>, transform_indices = @transform_4, window_bounds = array<i64: 16, 1>}, {transform_indices = @transform_5, window_bounds = array<i64: 1, 16, 128>}]} {
    %c0 = arith.constant 0 : index
    %c0_0 = arith.constant 0 : index
    %0 = vector.load %arg3[%c0, %c0_0] : memref<32x16xf32, #tpu.memory_space<vmem>>, vector<32x16xf32>
    %c0_1 = arith.constant 0 : index
    %c0_2 = arith.constant 0 : index
    %c0_3 = arith.constant 0 : index
    %1 = vector.load %arg2[%c0_1, %c0_2, %c0_3] : memref<1x16x128xf32, #tpu.memory_space<vmem>>, vector<1x16x128xf32>
    %2 = vector.shape_cast %1 : vector<1x16x128xf32> to vector<16x128xf32>
    %cst = arith.constant dense<0.000000e+00> : vector<32x128xf32>
    %3 = tpu.matmul %0, %2, %cst {dimension_numbers = #tpu.dot_dimension_numbers<[1], [0], [0], [1], [0, 0, 1, 1], [], []>} : vector<32x16xf32>, vector<16x128xf32>, vector<32x128xf32> -> vector<32x128xf32>
    %c0_4 = arith.constant 0 : index
    %c0_5 = arith.constant 0 : index
    %4 = vector.load %arg4[%c0_4, %c0_5] : memref<32x1xf32, #tpu.memory_space<vmem>>, vector<32x1xf32>
    %5 = vector.broadcast %4 : vector<32x1xf32> to vector<32x128xf32>
    %6 = arith.addf %3, %5 : vector<32x128xf32>
    %cst_6 = arith.constant 0.000000e+00 : f32
    %7 = vector.broadcast %cst_6 : f32 to vector<32x128xf32>
    %8 = arith.maximumf %6, %7 : vector<32x128xf32>
    %c0_7 = arith.constant 0 : index
    %c0_8 = arith.constant 0 : index
    %9 = vector.load %arg5[%c0_7, %c0_8] : memref<16x32xf32, #tpu.memory_space<vmem>>, vector<16x32xf32>
    %cst_9 = arith.constant dense<0.000000e+00> : vector<16x128xf32>
    %10 = tpu.matmul %9, %8, %cst_9 {dimension_numbers = #tpu.dot_dimension_numbers<[1], [0], [0], [1], [0, 0, 1, 1], [], []>} : vector<16x32xf32>, vector<32x128xf32>, vector<16x128xf32> -> vector<16x128xf32>
    %c0_10 = arith.constant 0 : index
    %c0_11 = arith.constant 0 : index
    %11 = vector.load %arg6[%c0_10, %c0_11] : memref<16x1xf32, #tpu.memory_space<vmem>>, vector<16x1xf32>
    %12 = vector.broadcast %11 : vector<16x1xf32> to vector<16x128xf32>
    %13 = arith.addf %10, %12 : vector<16x128xf32>
    %c0_12 = arith.constant 0 : index
    %c0_13 = arith.constant 0 : index
    %c0_14 = arith.constant 0 : index
    %14 = vector.load %arg7[%c0_12, %c0_13, %c0_14] : memref<1x16x128xf32, #tpu.memory_space<vmem>>, vector<1x16x128xf32>
    %15 = vector.shape_cast %14 : vector<1x16x128xf32> to vector<16x128xf32>
    %16 = vector.shape_cast %13 : vector<16x128xf32> to vector<1x16x128xf32>
    tpu.vector_store %arg7[%c0_12, %c0_13, %c0_14], %16 {strides = array<i32>} : memref<1x16x128xf32, #tpu.memory_space<vmem>>, vector<1x16x128xf32>,
    return
  }
  func.func @transform_0(%arg0: i32, %arg1: i32) -> (i32, i32, i32) {
    %c0_i32 = arith.constant 0 : i32
    %c0_i32_0 = arith.constant 0 : i32
    return %arg0, %c0_i32, %arg1 : i32, i32, i32
  }
  func.func @transform_1(%arg0: i32, %arg1: i32) -> (i32, i32) {
    %c0_i32 = arith.constant 0 : i32
    %c0_i32_0 = arith.constant 0 : i32
    %c0_i32_1 = arith.constant 0 : i32
    return %c0_i32, %c0_i32_0 : i32, i32
  }
  func.func @transform_2(%arg0: i32, %arg1: i32) -> (i32, i32) {
    %c0_i32 = arith.constant 0 : i32
    %c0_i32_0 = arith.constant 0 : i32
    %c0_i32_1 = arith.constant 0 : i32
    return %c0_i32, %c0_i32_0 : i32, i32
  }
  func.func @transform_3(%arg0: i32, %arg1: i32) -> (i32, i32) {
    %c0_i32 = arith.constant 0 : i32
    %c0_i32_0 = arith.constant 0 : i32
    %c0_i32_1 = arith.constant 0 : i32
    return %c0_i32, %c0_i32_0 : i32, i32
  }
  func.func @transform_4(%arg0: i32, %arg1: i32) -> (i32, i32) {
    %c0_i32 = arith.constant 0 : i32
    %c0_i32_0 = arith.constant 0 : i32
    %c0_i32_1 = arith.constant 0 : i32
    return %c0_i32, %c0_i32_0 : i32, i32
  }
  func.func @transform_5(%arg0: i32, %arg1: i32) -> (i32, i32, i32) {
    %c0_i32 = arith.constant 0 : i32
    %c0_i32_0 = arith.constant 0 : i32
    return %arg0, %c0_i32, %arg1 : i32, i32, i32
  }
}

</mosaic_0001>

<llo_original>
// kernel: tpu_custom_call.1
$region0: #{tpu_custom_call.1}
  #allocation0 [shape = 'u32[]', space=smem, size = 0x4, offset = 0x4, fixed_abs, tag = 'smem constant byte address 0x4 - core index']
  #allocation1 [shape = 'u32[72,128]{1,0:T(1,128)}', space=vmem, size = 0x9000, scoped, tag = 'internal scratch']
  %s0 = inlined_call_operand.vmem [shape: f32[2,16,8], index: 0, kind: input, shape index: {}]
  %s1 = inlined_call_operand.vmem [shape: f32[32,16], index: 1, kind: input, shape index: {}]
  %s2 = inlined_call_operand.vmem [shape: f32[32,1], index: 2, kind: input, shape index: {}]
  %s3 = inlined_call_operand.vmem [shape: f32[16,32], index: 3, kind: input, shape index: {}]
  %s4 = inlined_call_operand.vmem [shape: f32[16,1], index: 4, kind: input, shape index: {}]
  %s5 = inlined_call_operand.vmem [shape: f32[2,16,8], index: 5, kind: output, shape index: {}]
  %s6 = sld [smem:[#allocation0]]
  $region53: #{tpu_custom_call.1} parent=0
    _
  %s8 = ssub.s32 1, %s6
  %s9 = scalar_select 0, %s8, %s6
  loop: start=0, step=1, limit=4
  $region2: #{tpu_custom_call.1} parent=0 // loop_pre_header
    _
  $region3: #{tpu_custom_call.1} parent=0 // loop_header
    %s11 = sphi 0, %s15
    %p12 = scmp.ge.s32.totalorder %s11, 4
    %s18 = sphi 0, %s30
    %s19 = sphi 0, %s26
    %s20 = sphi 0, %s18
    %s21 = sphi 0, %s19
    %s22 = sphi 0, %s20
    %s23 = sphi 0, %s21
    %s35 = sphi 0, %s37
    %s38 = sphi 0, %s35
    %s39 = sphi 0, %s38
    %s55 = sphi 0, %s39
    %s59 = sphi 0, %s59
    %s61 = sphi 0, %s59
    %s62 = sphi 0, %s61
    %s76 = sphi 0, %s62
    %s80 = sphi 0, %s80
    %s82 = sphi 0, %s80
    %s83 = sphi 0, %s82
    %s97 = sphi 0, %s83
    %s101 = sphi 0, %s101
    %s103 = sphi 0, %s101
    %s104 = sphi 0, %s103
    %s118 = sphi 0, %s104
    %s122 = sphi 0, %s122
    %s124 = sphi 0, %s122
    %s125 = sphi 0, %s124
    %s139 = sphi 0, %s125
    %s147 = sphi 0, %s149
    %s150 = sphi 0, %s147
    %s151 = sphi 0, %s150
    %s167 = sphi 0, %s151
  $region4: #{tpu_custom_call.1} parent=0 // loop_header_branch
    %14 = sbr.rel (%p12) target = $region8
  $region5: #{tpu_custom_call.1} parent=0 // loop_body
    %s16 = ssub.s32 %s11, 1
    %s17 = ssub.s32 %s11, 2
    %s24 = sadd.s32 1, %s19
    %p25 = scmp.ge.s32.totalorder %s24, 1
    %s26 = scalar_select %p25, 0, %s24
    %s27 = sadd.s32 1, %s18
    %s28 = scalar_select %p25, %s27, %s18
    %p29 = scmp.ge.s32.totalorder %s28, 2
    %s30 = scalar_select %p29, 0, %s28
    %s31 = ssub.s32 %s18, %s30
    %s32 = ssub.s32 %s19, %s26
    %s33 = sor.u32 %s31, %s32
    %p34 = scmp.eq.s32.totalorder %s33, 0
    %s36 = sadd.s32 %s35, 1
    %s37 = scalar_select %p34, %s35, %s36
    %p40 = pneg %p34
    %p41 = scmp.eq.s32.totalorder %s11, 1
    %p42 = por %p40, %p41
    %p43 = scmp.ne.s32.totalorder %s35, %s38
    %p44 = scmp.eq.s32.totalorder %s11, 0
    %p45 = por %p43, %p44
    %p46 = scmp.ne.s32.totalorder %s35, %s38
    %p47 = scmp.eq.s32.totalorder %s16, 1
    %p48 = por %p46, %p47
    %p49 = scmp.ne.s32.totalorder %s38, %s39
    %p50 = scmp.eq.s32.totalorder %s16, 0
    %p51 = por %p49, %p50
    %p52 = scmp.ne.s32.totalorder %s38, %s39
    %p53 = scmp.eq.s32.totalorder %s17, 1
    %p54 = por %p52, %p53
    %p56 = scmp.ne.s32.totalorder %s39, %s55
    %p57 = scmp.eq.s32.totalorder %s17, 0
    %p58 = por %p56, %p57
    %s60 = sadd.s32 %s59, 1
    %p63 = scmp.eq.s32.totalorder %s11, 1
    %p64 = scmp.ne.s32.totalorder %s59, %s61
    %p65 = scmp.eq.s32.totalorder %s11, 0
    %p66 = por %p64, %p65
    %p67 = scmp.ne.s32.totalorder %s59, %s61
    %p68 = scmp.eq.s32.totalorder %s16, 1
    %p69 = por %p67, %p68
    %p70 = scmp.ne.s32.totalorder %s61, %s62
    %p71 = scmp.eq.s32.totalorder %s16, 0
    %p72 = por %p70, %p71
    %p73 = scmp.ne.s32.totalorder %s61, %s62
    %p74 = scmp.eq.s32.totalorder %s17, 1
    %p75 = por %p73, %p74
    %p77 = scmp.ne.s32.totalorder %s62, %s76
    %p78 = scmp.eq.s32.totalorder %s17, 0
    %p79 = por %p77, %p78
    %s81 = sadd.s32 %s80, 1
    %p84 = scmp.eq.s32.totalorder %s11, 1
    %p85 = scmp.ne.s32.totalorder %s80, %s82
    %p86 = scmp.eq.s32.totalorder %s11, 0
    %p87 = por %p85, %p86
    %p88 = scmp.ne.s32.totalorder %s80, %s82
    %p89 = scmp.eq.s32.totalorder %s16, 1
    %p90 = por %p88, %p89
    %p91 = scmp.ne.s32.totalorder %s82, %s83
    %p92 = scmp.eq.s32.totalorder %s16, 0
    %p93 = por %p91, %p92
    %p94 = scmp.ne.s32.totalorder %s82, %s83
    %p95 = scmp.eq.s32.totalorder %s17, 1
    %p96 = por %p94, %p95
    %p98 = scmp.ne.s32.totalorder %s83, %s97
    %p99 = scmp.eq.s32.totalorder %s17, 0
    %p100 = por %p98, %p99
    %s102 = sadd.s32 %s101, 1
    %p105 = scmp.eq.s32.totalorder %s11, 1
    %p106 = scmp.ne.s32.totalorder %s101, %s103
    %p107 = scmp.eq.s32.totalorder %s11, 0
    %p108 = por %p106, %p107
    %p109 = scmp.ne.s32.totalorder %s101, %s103
    %p110 = scmp.eq.s32.totalorder %s16, 1
    %p111 = por %p109, %p110
    %p112 = scmp.ne.s32.totalorder %s103, %s104
    %p113 = scmp.eq.s32.totalorder %s16, 0
    %p114 = por %p112, %p113
    %p115 = scmp.ne.s32.totalorder %s103, %s104
    %p116 = scmp.eq.s32.totalorder %s17, 1
    %p117 = por %p115, %p116
    %p119 = scmp.ne.s32.totalorder %s104, %s118
    %p120 = scmp.eq.s32.totalorder %s17, 0
    %p121 = por %p119, %p120
    %s123 = sadd.s32 %s122, 1
    %p126 = scmp.eq.s32.totalorder %s11, 1
    %p127 = scmp.ne.s32.totalorder %s122, %s124
    %p128 = scmp.eq.s32.totalorder %s11, 0
    %p129 = por %p127, %p128
    %p130 = scmp.ne.s32.totalorder %s122, %s124
    %p131 = scmp.eq.s32.totalorder %s16, 1
    %p132 = por %p130, %p131
    %p133 = scmp.ne.s32.totalorder %s124, %s125
    %p134 = scmp.eq.s32.totalorder %s16, 0
    %p135 = por %p133, %p134
    %p136 = scmp.ne.s32.totalorder %s124, %s125
    %p137 = scmp.eq.s32.totalorder %s17, 1
    %p138 = por %p136, %p137
    %p140 = scmp.ne.s32.totalorder %s125, %s139
    %p141 = scmp.eq.s32.totalorder %s17, 0
    %p142 = por %p140, %p141
    %s143 = ssub.s32 %s18, %s30
    %s144 = ssub.s32 %s19, %s26
    %s145 = sor.u32 %s143, %s144
    %p146 = scmp.eq.s32.totalorder %s145, 0
    %s148 = sadd.s32 %s147, 1
    %s149 = scalar_select %p146, %s147, %s148
    %p152 = pneg %p146
    %p153 = scmp.eq.s32.totalorder %s11, 1
    %p154 = por %p152, %p153
    %p155 = scmp.ne.s32.totalorder %s147, %s150
    %p156 = scmp.eq.s32.totalorder %s11, 0
    %p157 = por %p155, %p156
    %p158 = scmp.ne.s32.totalorder %s147, %s150
    %p159 = scmp.eq.s32.totalorder %s16, 1
    %p160 = por %p158, %p159
    %p161 = scmp.ne.s32.totalorder %s150, %s151
    %p162 = scmp.eq.s32.totalorder %s16, 0
    %p163 = por %p161, %p162
    %p164 = scmp.ne.s32.totalorder %s150, %s151
    %p165 = scmp.eq.s32.totalorder %s17, 1
    %p166 = por %p164, %p165
    %p168 = scmp.ne.s32.totalorder %s151, %s167
    %p169 = scmp.eq.s32.totalorder %s17, 0
    %p170 = por %p168, %p169
    %p171 = scmp.le.s32.totalorder 1, %s11
    %p172 = scmp.lt.s32.totalorder %s11, 3
    %p173 = pnand %p171, %p172
    %p174 = pneg %p173
    // Predicated region
    $region9: #{tpu_custom_call.1} parent=5 // pred_check
      _
    $region10: #{tpu_custom_call.1} parent=5 // pred_check_branch
      %176 = sbr.rel (%p173) target = $region12
    $region11: #{tpu_custom_call.1} parent=5 // pred_region
      %s177 = ssub.s32 %s11, 1
      // Predicated region
      $region13: #{tpu_custom_call.1} parent=11 // pred_check
        %p178 = pneg %p72
      $region14: #{tpu_custom_call.1} parent=11 // pred_check_branch
        %180 = sbr.rel (%p178) target = $region16
      $region15: #{tpu_custom_call.1} parent=11 // pred_region
        _
      $region16: #{tpu_custom_call.1} parent=11 // pred_fallthru
        _
      // Predicated region
      $region17: #{tpu_custom_call.1} parent=11 // pred_check
        %p181 = pneg %p93
      $region18: #{tpu_custom_call.1} parent=11 // pred_check_branch
        %183 = sbr.rel (%p181) target = $region20
      $region19: #{tpu_custom_call.1} parent=11 // pred_region
        _
      $region20: #{tpu_custom_call.1} parent=11 // pred_fallthru
        _
      // Predicated region
      $region21: #{tpu_custom_call.1} parent=11 // pred_check
        %p184 = pneg %p114
      $region22: #{tpu_custom_call.1} parent=11 // pred_check_branch
        %186 = sbr.rel (%p184) target = $region24
      $region23: #{tpu_custom_call.1} parent=11 // pred_region
        _
      $region24: #{tpu_custom_call.1} parent=11 // pred_fallthru
        _
      // Predicated region
      $region25: #{tpu_custom_call.1} parent=11 // pred_check
        %p187 = pneg %p135
      $region26: #{tpu_custom_call.1} parent=11 // pred_check_branch
        %189 = sbr.rel (%p187) target = $region28
      $region27: #{tpu_custom_call.1} parent=11 // pred_region
        _
      $region28: #{tpu_custom_call.1} parent=11 // pred_fallthru
        _
    $region12: #{tpu_custom_call.1} parent=5 // pred_fallthru
      _
    %p190 = scmp.lt.s32.totalorder %s11, 2
    // Predicated region
    $region29: #{tpu_custom_call.1} parent=5 // pred_check
      %p191 = pneg %p190
    $region30: #{tpu_custom_call.1} parent=5 // pred_check_branch
      %193 = sbr.rel (%p191) target = $region32
    $region31: #{tpu_custom_call.1} parent=5 // pred_region
      // Predicated region
      $region33: #{tpu_custom_call.1} parent=31 // pred_check
        %p194 = pneg %p45
      $region34: #{tpu_custom_call.1} parent=31 // pred_check_branch
        %196 = sbr.rel (%p194) target = $region36
      $region35: #{tpu_custom_call.1} parent=31 // pred_region
        %p197 = scmp.lt.s32.totalorder %s18, 1
        %s198 = scalar_select %p197, %s18, 1
        %p199 = scmp.lt.s32.totalorder %s19, 0
        %s200 = scalar_select %p199, %s19, 0
        %s201 = smul.addr %s198, 2
        %s202 = sadd.s32 %s200, %s201
        %s203 = smul.addr %s202, 8
        %s204 = scalar_lea.vmem %s0, %s203
      $region36: #{tpu_custom_call.1} parent=31 // pred_fallthru
        _
    $region32: #{tpu_custom_call.1} parent=5 // pred_fallthru
      _
    %p205 = scmp.le.s32.totalorder 1, %s11
    %p206 = scmp.lt.s32.totalorder %s11, 3
    %p207 = pnand %p205, %p206
    %p208 = pneg %p207
    // Predicated region
    $region37: #{tpu_custom_call.1} parent=5 // pred_check
      _
    $region38: #{tpu_custom_call.1} parent=5 // pred_check_branch
      %210 = sbr.rel (%p207) target = $region40
    $region39: #{tpu_custom_call.1} parent=5 // pred_region
      %s211 = ssub.s32 %s11, 1
      %p212 = scmp.lt.s32.totalorder %s20, 1
      %s213 = scalar_select %p212, %s20, 1
      %p214 = scmp.lt.s32.totalorder %s21, 0
      %s215 = scalar_select %p214, %s21, 0
      %s216 = smul.addr %s213, 2
      %s217 = sadd.s32 %s215, %s216
      %s218 = smul.addr %s217, 8
      %s219 = scalar_lea.vmem %s0, %s218
      %p220 = pneg %p51
      %p221 = pneg %p48
      %p222 = pneg %p72
      %p223 = pneg %p69
      %p224 = pneg %p93
      %p225 = pneg %p90
      %p226 = pneg %p114
      %p227 = pneg %p111
      %p228 = pneg %p135
      %p229 = pneg %p132
      %p230 = pneg %p163
      %p231 = pneg %p160
      %p232 = scmp.lt.s32.totalorder %s20, 1
      %s233 = scalar_select %p232, %s20, 1
      %p234 = scmp.lt.s32.totalorder %s21, 0
      %s235 = scalar_select %p234, %s21, 0
      %s236 = smul.addr %s233, 2
      %s237 = sadd.s32 %s235, %s236
      %s238 = smul.addr %s237, 8
      %s239 = scalar_lea.vmem %s5, %s238
      %p240 = scmp.lt.s32.totalorder %s20, 1
      %s241 = scalar_select %p240, %s20, 1
      %p242 = scmp.lt.s32.totalorder %s21, 0
      %s243 = scalar_select %p242, %s21, 0
      %s244 = smul.addr %s241, 2
      %s245 = sadd.s32 %s243, %s244
      %s246 = smul.addr %s245, 8
      %s247 = scalar_lea.vmem %s0, %s246
      %p248 = scmp.lt.s32.totalorder %s20, 1
      %s249 = scalar_select %p248, %s20, 1
      %p250 = scmp.lt.s32.totalorder %s21, 0
      %s251 = scalar_select %p250, %s21, 0
      %s252 = smul.addr %s249, 2
      %s253 = sadd.s32 %s251, %s252
      %s254 = smul.addr %s253, 8
      %s255 = scalar_lea.vmem %s5, %s254
      %v256 = vld [vmem:[%s1] sm:$0xff]
      %v257 = vld [vmem:[%s1 + $0x8] sm:$0xff]
      %v258 = vld [vmem:[%s1 + $0x10] sm:$0xff]
      %v259 = vld [vmem:[%s1 + $0x18] sm:$0xff]
      %v260 = vld [vmem:[%s247] sm:$0xff]
      %v261 = vld [vmem:[%s247 + $0x8] sm:$0xff]
      %v262 = vld [vmem:[%s2] sm:$0xff]
      %v263 = vld [vmem:[%s2 + $0x8] sm:$0xff]
      %v264 = vld [vmem:[%s2 + $0x10] sm:$0xff]
      %v265 = vld [vmem:[%s2 + $0x18] sm:$0xff]
      %267 = vset.pattern.permute.xlu0 0
      %268 = vperm.xlu0 %267, %v262
      %v269 = vpop.permute.xlu0 %268
      %272 = vset.pattern.permute.xlu0 0
      %273 = vperm.xlu0 %272, %v263
      %v274 = vpop.permute.xlu0 %273
      %277 = vset.pattern.permute.xlu0 0
      %278 = vperm.xlu0 %277, %v264
      %v279 = vpop.permute.xlu0 %278
      %282 = vset.pattern.permute.xlu0 0
      %283 = vperm.xlu0 %282, %v265
      %v284 = vpop.permute.xlu0 %283
      %vm286 = vcmask 130048
      %v288 = vsel %vm286, %v256, 0
      %v291 = vsel %vm286, %v257, 0
      %v294 = vsel %vm286, %v258, 0
      %v297 = vsel %vm286, %v259, 0
      %299 = vmatpush.msra.mxu0 0.0
      %300 = vmatpush.msra.mxu0 0.0
      %301 = vmatpush.msra.mxu0 0.0
      %302 = vmatpush.msra.mxu0 0.0
      %303 = vmatpush.msra.mxu0 0.0
      %304 = vmatpush.msra.mxu0 0.0
      %305 = vmatpush.msra.mxu0 0.0
      %306 = vmatpush.msra.mxu0 0.0
      %307 = vmatpush.msra.mxu0 0.0
      %308 = vmatpush.msra.mxu0 0.0
      %309 = vmatpush.msra.mxu0 0.0
      %310 = vmatpush.msra.mxu0 0.0
      %311 = vmatpush.msra.mxu0 0.0
      %312 = vmatpush.msra.mxu0 0.0
      %313 = vmatpush.msra.mxu0 %v261
      %314 = vmatpush.msra.mxu0 %v260
      %315 = vmatmul.f32.gmra.mxu0 %v288
      %v316 = vpop.f32.mrf.mxu0
      %v317 = vadd.f32 %v269, %v316
      %318 = vmatmul.f32.gmra.mxu0 %v291
      %v319 = vpop.f32.mrf.mxu0
      %v320 = vadd.f32 %v274, %v319
      %321 = vmatmul.f32.gmra.mxu0 %v294
      %v322 = vpop.f32.mrf.mxu0
      %v323 = vadd.f32 %v279, %v322
      %324 = vmatmul.f32.gmra.mxu0 %v297
      %v325 = vpop.f32.mrf.mxu0
      %v326 = vadd.f32 %v284, %v325
      %327 = vdwg.mxu0
      %v328 = vmax.f32 %v317, 0.0
      %v329 = vmax.f32 %v320, 0.0
      %v330 = vmax.f32 %v323, 0.0
      %v331 = vmax.f32 %v326, 0.0
      %v332 = vld [vmem:[%s3] sm:$0xff]
      %v333 = vld [vmem:[%s3 + $0x8] sm:$0xff]
      %v334 = vld [vmem:[%s4] sm:$0xff]
      %v335 = vld [vmem:[%s4 + $0x8] sm:$0xff]
      %337 = vset.pattern.permute.xlu0 0
      %338 = vperm.xlu0 %337, %v334
      %v339 = vpop.permute.xlu0 %338
      %342 = vset.pattern.permute.xlu0 0
      %343 = vperm.xlu0 %342, %v335
      %v344 = vpop.permute.xlu0 %343
      %vm346 = vcmask 261120
      %v348 = vsel %vm346, %v332, 0
      %v351 = vsel %vm346, %v333, 0
      %353 = vmatpush.msra.mxu0 0.0
      %354 = vmatpush.msra.mxu0 0.0
      %355 = vmatpush.msra.mxu0 0.0
      %356 = vmatpush.msra.mxu0 0.0
      %357 = vmatpush.msra.mxu0 0.0
      %358 = vmatpush.msra.mxu0 0.0
      %359 = vmatpush.msra.mxu0 0.0
      %360 = vmatpush.msra.mxu0 0.0
      %361 = vmatpush.msra.mxu0 0.0
      %362 = vmatpush.msra.mxu0 0.0
      %363 = vmatpush.msra.mxu0 0.0
      %364 = vmatpush.msra.mxu0 0.0
      %365 = vmatpush.msra.mxu0 %v331
      %366 = vmatpush.msra.mxu0 %v330
      %367 = vmatpush.msra.mxu0 %v329
      %368 = vmatpush.msra.mxu0 %v328
      %369 = vmatmul.f32.gmra.mxu0 %v348
      %v370 = vpop.f32.mrf.mxu0
      %v371 = vadd.f32 %v339, %v370
      %372 = vmatmul.f32.gmra.mxu0 %v351
      %v373 = vpop.f32.mrf.mxu0
      %v374 = vadd.f32 %v344, %v373
      %375 = vdwg.mxu0
      %376 = vst [vmem:[%s255] sm:$0xff] %v371
      %377 = vst [vmem:[%s255 + $0x8] sm:$0xff] %v374
      %p378 = scmp.lt.s32.totalorder %s20, 1
      %s379 = scalar_select %p378, %s20, 1
      %p380 = scmp.lt.s32.totalorder %s21, 0
      %s381 = scalar_select %p380, %s21, 0
      %s382 = smul.addr %s379, 2
      %s383 = sadd.s32 %s381, %s382
      %s384 = smul.addr %s383, 8
      %s385 = scalar_lea.vmem %s5, %s384
      // Predicated region
      $region41: #{tpu_custom_call.1} parent=39 // pred_check
        %p386 = pneg %p160
      $region42: #{tpu_custom_call.1} parent=39 // pred_check_branch
        %388 = sbr.rel (%p386) target = $region44
      $region43: #{tpu_custom_call.1} parent=39 // pred_region
        _
      $region44: #{tpu_custom_call.1} parent=39 // pred_fallthru
        _
    $region40: #{tpu_custom_call.1} parent=5 // pred_fallthru
      _
    %p389 = scmp.le.s32.totalorder 2, %s11
    // Predicated region
    $region45: #{tpu_custom_call.1} parent=5 // pred_check
      %p390 = pneg %p389
    $region46: #{tpu_custom_call.1} parent=5 // pred_check_branch
      %392 = sbr.rel (%p390) target = $region48
    $region47: #{tpu_custom_call.1} parent=5 // pred_region
      %s393 = ssub.s32 %s11, 2
      // Predicated region
      $region49: #{tpu_custom_call.1} parent=47 // pred_check
        %p394 = pneg %p166
      $region50: #{tpu_custom_call.1} parent=47 // pred_check_branch
        %396 = sbr.rel (%p394) target = $region52
      $region51: #{tpu_custom_call.1} parent=47 // pred_region
        %p397 = scmp.lt.s32.totalorder %s22, 1
        %s398 = scalar_select %p397, %s22, 1
        %p399 = scmp.lt.s32.totalorder %s23, 0
        %s400 = scalar_select %p399, %s23, 0
        %s401 = smul.addr %s398, 2
        %s402 = sadd.s32 %s400, %s401
        %s403 = smul.addr %s402, 8
        %s404 = scalar_lea.vmem %s5, %s403
      $region52: #{tpu_custom_call.1} parent=47 // pred_fallthru
        _
    $region48: #{tpu_custom_call.1} parent=5 // pred_fallthru
      _
  $region6: #{tpu_custom_call.1} parent=0 // loop_footer
    %s15 = sadd.s32 1, %s11
  $region7: #{tpu_custom_call.1} parent=0 // loop_footer_branch
    %10 = sbr.rel target = $region3
  $region8: #{tpu_custom_call.1} parent=0 // loop_exit
    _

</llo_original>
